<compile_context>
chip_gen: v7x
topology: tpu7x:2x2x1
jax: 0.10.0
libtpu: 0.0.40
codegen_flags: <defaults>
</compile_context>

<pallas_src>
import jax
import jax.numpy as jnp
from jax.experimental import pallas as pl
from jax.experimental.pallas import tpu as pltpu


def _spatial_gradient_kernel(x_ref, o_ref):
    # x_ref: (TB, H, W)     unpadded images (replicate padding is built in-kernel)
    # o_ref: (TB, 2, H, W)  [:, 0] = gx (sobel_x), [:, 1] = gy (sobel_y)
    x = x_ref[...].astype(jnp.float32)

    # Horizontal (lane-axis) neighbours with replicate ("edge") clamping.
    xl = jnp.concatenate([x[:, :, :1], x[:, :, :-1]], axis=2)   # x[., ., j-1]
    xr = jnp.concatenate([x[:, :, 1:], x[:, :, -1:]], axis=2)   # x[., ., j+1]

    # Separable sobel: row-filtered intermediates.
    d_h = xr - xl                 # [-1, 0, 1] along W   (for gx)
    s_h = (xl + xr) + 2.0 * x     # [ 1, 2, 1] along W   (for gy)

    def up(a):     # a[., i-1, .] with replicate clamp (sublane axis)
        return jnp.concatenate([a[:, :1, :], a[:, :-1, :]], axis=1)

    def down(a):   # a[., i+1, .] with replicate clamp
        return jnp.concatenate([a[:, 1:, :], a[:, -1:, :]], axis=1)

    inv_norm = 0.125  # 1 / sum(|sobel|) = 1/8, applied once at the end
    gx = (up(d_h) + 2.0 * d_h + down(d_h)) * inv_norm   # [1, 2, 1] along H
    gy = (down(s_h) - up(s_h)) * inv_norm               # [-1, 0, 1] along H

    o_ref[...] = jnp.stack([gx, gy], axis=1).astype(o_ref.dtype)


def _choose_block_batch(bc, h, w, itemsize, budget_bytes=8 * 1024 * 1024):
    """Largest divisor of bc whose (input + 2-ch output) block fits the budget,
    while keeping at least 2 grid steps so both v7x TensorCores get work."""
    per_img = 3 * h * w * itemsize
    cap = max(1, int(budget_bytes // max(per_img, 1)))
    cap = min(cap, bc)
    if bc >= 2:
        cap = min(cap, max(1, bc // 2))
    tb = 1
    for d in range(1, cap + 1):
        if bc % d == 0:
            tb = d
    return tb


def spatial_gradient(x: jax.Array, mode: str = "sobel", order: int = 1,
                     normalized: bool = True) -> jax.Array:
    """x: (B, C, H, W) -> (B, C, 2, H, W). Only mode='sobel', order=1, normalized=True."""
    if mode != "sobel" or order != 1 or not normalized:
        raise NotImplementedError("Only mode='sobel', order=1, normalized=True supported.")
    b, c, h, w = x.shape
    bc = b * c
    xf = x.reshape(bc, h, w)

    itemsize = jnp.dtype(x.dtype).itemsize
    tb = _choose_block_batch(bc, h, w, itemsize)
    grid = (bc // tb,)

    # VMEM: double-buffered in/out blocks + headroom for f32 temporaries.
    block_bytes = tb * 3 * h * w * itemsize
    temps_bytes = 6 * tb * h * w * 4
    vmem_limit = int(min(max(2 * block_bytes + temps_bytes + (4 << 20), 32 << 20),
                         56 << 20))

    out = pl.pallas_call(
        _spatial_gradient_kernel,
        out_shape=jax.ShapeDtypeStruct((bc, 2, h, w), x.dtype),
        grid=grid,
        in_specs=[pl.BlockSpec((tb, h, w), lambda i: (i, 0, 0))],
        out_specs=pl.BlockSpec((tb, 2, h, w), lambda i: (i, 0, 0, 0)),
        compiler_params=pltpu.CompilerParams(
            dimension_semantics=("parallel",),
            vmem_limit_bytes=vmem_limit,
        ),
    )(xf)

    return out.reshape(b, c, 2, h, w)


def _spatial_gradient_ref(x: jax.Array) -> jax.Array:
    """Pure-JAX reference: replicate pad + explicit 3x3 cross-correlation / 8."""
    kx = jnp.array([[-1.0, 0.0, 1.0], [-2.0, 0.0, 2.0], [-1.0, 0.0, 1.0]],
                   jnp.float32) / 8.0
    ky = kx.T
    b, c, h, w = x.shape
    p = jnp.pad(x.astype(jnp.float32), ((0, 0), (0, 0), (1, 1), (1, 1)), mode="edge")
    gx = jnp.zeros((b, c, h, w), jnp.float32)
    gy = jnp.zeros((b, c, h, w), jnp.float32)
    for di in range(3):
        for dj in range(3):
            win = p[:, :, di:di + h, dj:dj + w]
            gx = gx + kx[di, dj] * win
            gy = gy + ky[di, dj] * win
    return jnp.stack([gx, gy], axis=2).astype(x.dtype)


if __name__ == "__main__":
    key = jax.random.PRNGKey(0)
    x = jax.random.normal(key, (2, 4, 16, 16), dtype=jnp.float32)

    out = jax.block_until_ready(spatial_gradient(x))
    assert out.shape == (2, 4, 2, 16, 16), out.shape
    assert out.dtype == x.dtype

    ref = jax.block_until_ready(_spatial_gradient_ref(x))
    assert jnp.allclose(out, ref, atol=1e-5, rtol=1e-5), float(jnp.abs(out - ref).max())

    print("KERNEL_OK")
</pallas_src>

<mosaic_0001>
module attributes {stable_mosaic.version = 11 : i64} {
  func.func @_spatial_gradient_kernel(%arg0: i32, %arg1: memref<4x16x16xf32, #tpu.memory_space<vmem>>, %arg2: memref<4x2x16x16xf32, #tpu.memory_space<vmem>>) attributes {dimension_semantics = [#tpu.dimension_semantics<parallel>], iteration_bounds = array<i64: 2>, scalar_prefetch = 0 : i64, scratch_operands = 0 : i64, tpu.core_type = #tpu.core_type<tc>, window_params = [{transform_indices = @transform_0, window_bounds = array<i64: 4, 16, 16>}, {transform_indices = @transform_1, window_bounds = array<i64: 4, 2, 16, 16>}]} {
    %c0 = arith.constant 0 : index
    %c0_0 = arith.constant 0 : index
    %c0_1 = arith.constant 0 : index
    %0 = vector.load %arg1[%c0, %c0_0, %c0_1] : memref<4x16x16xf32, #tpu.memory_space<vmem>>, vector<4x16x16xf32>
    %1 = vector.extract_strided_slice %0 {offsets = [0, 0, 0], sizes = [4, 16, 1], strides = [1, 1, 1]} : vector<4x16x16xf32> to vector<4x16x1xf32>
    %2 = vector.extract_strided_slice %0 {offsets = [0, 0, 0], sizes = [4, 16, 15], strides = [1, 1, 1]} : vector<4x16x16xf32> to vector<4x16x15xf32>
    %3 = tpu.concatenate %1, %2 in 2 : vector<4x16x1xf32>, vector<4x16x15xf32> -> vector<4x16x16xf32>
    %4 = vector.extract_strided_slice %0 {offsets = [0, 0, 1], sizes = [4, 16, 15], strides = [1, 1, 1]} : vector<4x16x16xf32> to vector<4x16x15xf32>
    %5 = vector.extract_strided_slice %0 {offsets = [0, 0, 15], sizes = [4, 16, 1], strides = [1, 1, 1]} : vector<4x16x16xf32> to vector<4x16x1xf32>
    %6 = tpu.concatenate %4, %5 in 2 : vector<4x16x15xf32>, vector<4x16x1xf32> -> vector<4x16x16xf32>
    %7 = arith.subf %6, %3 : vector<4x16x16xf32>
    %8 = arith.addf %3, %6 : vector<4x16x16xf32>
    %cst = arith.constant 2.000000e+00 : f32
    %9 = vector.broadcast %cst : f32 to vector<4x16x16xf32>
    %10 = arith.mulf %9, %0 : vector<4x16x16xf32>
    %11 = arith.addf %8, %10 : vector<4x16x16xf32>
    %12 = vector.extract_strided_slice %7 {offsets = [0, 0, 0], sizes = [4, 1, 16], strides = [1, 1, 1]} : vector<4x16x16xf32> to vector<4x1x16xf32>
    %13 = vector.extract_strided_slice %7 {offsets = [0, 0, 0], sizes = [4, 15, 16], strides = [1, 1, 1]} : vector<4x16x16xf32> to vector<4x15x16xf32>
    %14 = tpu.concatenate %12, %13 in 1 : vector<4x1x16xf32>, vector<4x15x16xf32> -> vector<4x16x16xf32>
    %cst_2 = arith.constant 2.000000e+00 : f32
    %15 = vector.broadcast %cst_2 : f32 to vector<4x16x16xf32>
    %16 = arith.mulf %15, %7 : vector<4x16x16xf32>
    %17 = arith.addf %14, %16 : vector<4x16x16xf32>
    %18 = vector.extract_strided_slice %7 {offsets = [0, 1, 0], sizes = [4, 15, 16], strides = [1, 1, 1]} : vector<4x16x16xf32> to vector<4x15x16xf32>
    %19 = vector.extract_strided_slice %7 {offsets = [0, 15, 0], sizes = [4, 1, 16], strides = [1, 1, 1]} : vector<4x16x16xf32> to vector<4x1x16xf32>
    %20 = tpu.concatenate %18, %19 in 1 : vector<4x15x16xf32>, vector<4x1x16xf32> -> vector<4x16x16xf32>
    %21 = arith.addf %17, %20 : vector<4x16x16xf32>
    %cst_3 = arith.constant 1.250000e-01 : f32
    %22 = vector.broadcast %cst_3 : f32 to vector<4x16x16xf32>
    %23 = arith.mulf %21, %22 : vector<4x16x16xf32>
    %24 = vector.extract_strided_slice %11 {offsets = [0, 1, 0], sizes = [4, 15, 16], strides = [1, 1, 1]} : vector<4x16x16xf32> to vector<4x15x16xf32>
    %25 = vector.extract_strided_slice %11 {offsets = [0, 15, 0], sizes = [4, 1, 16], strides = [1, 1, 1]} : vector<4x16x16xf32> to vector<4x1x16xf32>
    %26 = tpu.concatenate %24, %25 in 1 : vector<4x15x16xf32>, vector<4x1x16xf32> -> vector<4x16x16xf32>
    %27 = vector.extract_strided_slice %11 {offsets = [0, 0, 0], sizes = [4, 1, 16], strides = [1, 1, 1]} : vector<4x16x16xf32> to vector<4x1x16xf32>
    %28 = vector.extract_strided_slice %11 {offsets = [0, 0, 0], sizes = [4, 15, 16], strides = [1, 1, 1]} : vector<4x16x16xf32> to vector<4x15x16xf32>
    %29 = tpu.concatenate %27, %28 in 1 : vector<4x1x16xf32>, vector<4x15x16xf32> -> vector<4x16x16xf32>
    %30 = arith.subf %26, %29 : vector<4x16x16xf32>
    %cst_4 = arith.constant 1.250000e-01 : f32
    %31 = vector.broadcast %cst_4 : f32 to vector<4x16x16xf32>
    %32 = arith.mulf %30, %31 : vector<4x16x16xf32>
    %33 = vector.shape_cast %23 : vector<4x16x16xf32> to vector<4x1x16x16xf32>
    %34 = vector.shape_cast %32 : vector<4x16x16xf32> to vector<4x1x16x16xf32>
    %35 = tpu.concatenate %33, %34 in 1 : vector<4x1x16x16xf32>, vector<4x1x16x16xf32> -> vector<4x2x16x16xf32>
    %c0_5 = arith.constant 0 : index
    %c0_6 = arith.constant 0 : index
    %c0_7 = arith.constant 0 : index
    %c0_8 = arith.constant 0 : index
    %36 = vector.load %arg2[%c0_5, %c0_6, %c0_7, %c0_8] : memref<4x2x16x16xf32, #tpu.memory_space<vmem>>, vector<4x2x16x16xf32>
    tpu.vector_store %arg2[%c0_5, %c0_6, %c0_7, %c0_8], %35 {strides = array<i32>} : memref<4x2x16x16xf32, #tpu.memory_space<vmem>>, vector<4x2x16x16xf32>,
    return
  }
  func.func @transform_0(%arg0: i32) -> (i32, i32, i32) {
    %c0_i32 = arith.constant 0 : i32
    %c0_i32_0 = arith.constant 0 : i32
    %c0_i32_1 = arith.constant 0 : i32
    return %arg0, %c0_i32, %c0_i32_0 : i32, i32, i32
  }
  func.func @transform_1(%arg0: i32) -> (i32, i32, i32, i32) {
    %c0_i32 = arith.constant 0 : i32
    %c0_i32_0 = arith.constant 0 : i32
    %c0_i32_1 = arith.constant 0 : i32
    %c0_i32_2 = arith.constant 0 : i32
    return %arg0, %c0_i32, %c0_i32_0, %c0_i32_1 : i32, i32, i32, i32
  }
}

</mosaic_0001>

<llo_original>
// kernel: tpu_custom_call.1
$region0: #{tpu_custom_call.1}
  #allocation0 [shape = 'u32[]', space=smem, size = 0x4, offset = 0x4, fixed_abs, tag = 'smem constant byte address 0x4 - core index']
  #allocation1 [shape = 'u32[144,128]{1,0:T(1,128)}', space=vmem, size = 0x12000, scoped, tag = 'internal scratch']
  %s0 = inlined_call_operand.hbm [shape: f32[8,16,16], index: 0, kind: input, shape index: {}]
  %s1 = inlined_call_operand.hbm [shape: f32[8,2,16,16], index: 1, kind: output, shape index: {}]
  %s2 = sld [smem:[#allocation0]]
  $region41: #{tpu_custom_call.1} parent=0
    _
  %s4 = ssub.s32 1, %s2
  %s5 = scalar_select 0, %s4, %s2
  $region1: #{tpu_custom_call.1} parent=0
    #allocation2 [shape = 'u8[65536]{0}', space=vmem, size = 0x10000, scoped, tag = 'input window, operand 0']
    #allocation3 [shape = 's32[2]{0}', space=sflag, size = 0x8, scoped, tag = 'scoped memory for tpu_custom_call.1']
    #allocation4 [shape = 's32[2]{0}', space=sflag, size = 0x8, scoped, tag = 'scoped memory for tpu_custom_call.1']
    #allocation5 [shape = 'u8[131072]{0}', space=vmem, size = 0x20000, scoped, tag = 'output window, operand 0']
    %6 = vsyncpa [#allocation3], 0
    %s7 = scalar_lea.sflag [#allocation3], 1
    %8 = vsyncpa %s7, 0
    %9 = vsyncpa [#allocation4], 0
    %s10 = scalar_lea.sflag [#allocation4], 1
    %11 = vsyncpa %s10, 0
    loop: start=0, step=1, limit=4
    $region2: #{tpu_custom_call.1} parent=1 // loop_pre_header
      _
    $region3: #{tpu_custom_call.1} parent=1 // loop_header
      %s13 = sphi 0, %s17
      %p14 = scmp.ge.s32.totalorder %s13, 4
      %s23 = sphi 0, %s25
      %s26 = sphi 0, %s23
      %s27 = sphi 0, %s26
      %s43 = sphi 0, %s27
      %s49 = sphi 0, %s51
      %s52 = sphi 0, %s49
      %s53 = sphi 0, %s52
      %s69 = sphi 0, %s53
    $region4: #{tpu_custom_call.1} parent=1 // loop_header_branch
      %16 = sbr.rel (%p14) target = $region8
    $region5: #{tpu_custom_call.1} parent=1 // loop_body
      %s18 = ssub.s32 %s13, 1
      %s19 = ssub.s32 %s13, 2
      %s20 = sadd.s32 %s13, 1
      %s21 = ssub.s32 %s13, %s20
      %p22 = scmp.eq.s32.totalorder %s21, 0
      %s24 = sadd.s32 %s23, 1
      %s25 = scalar_select %p22, %s23, %s24
      %p28 = pneg %p22
      %p29 = scmp.eq.s32.totalorder %s13, 1
      %p30 = por %p28, %p29
      %p31 = scmp.ne.s32.totalorder %s23, %s26
      %p32 = scmp.eq.s32.totalorder %s13, 0
      %p33 = por %p31, %p32
      %p34 = scmp.ne.s32.totalorder %s23, %s26
      %p35 = scmp.eq.s32.totalorder %s18, 1
      %p36 = por %p34, %p35
      %p37 = scmp.ne.s32.totalorder %s26, %s27
      %p38 = scmp.eq.s32.totalorder %s18, 0
      %p39 = por %p37, %p38
      %p40 = scmp.ne.s32.totalorder %s26, %s27
      %p41 = scmp.eq.s32.totalorder %s19, 1
      %p42 = por %p40, %p41
      %p44 = scmp.ne.s32.totalorder %s27, %s43
      %p45 = scmp.eq.s32.totalorder %s19, 0
      %p46 = por %p44, %p45
      %s47 = ssub.s32 %s13, %s20
      %p48 = scmp.eq.s32.totalorder %s47, 0
      %s50 = sadd.s32 %s49, 1
      %s51 = scalar_select %p48, %s49, %s50
      %p54 = pneg %p48
      %p55 = scmp.eq.s32.totalorder %s13, 1
      %p56 = por %p54, %p55
      %p57 = scmp.ne.s32.totalorder %s49, %s52
      %p58 = scmp.eq.s32.totalorder %s13, 0
      %p59 = por %p57, %p58
      %p60 = scmp.ne.s32.totalorder %s49, %s52
      %p61 = scmp.eq.s32.totalorder %s18, 1
      %p62 = por %p60, %p61
      %p63 = scmp.ne.s32.totalorder %s52, %s53
      %p64 = scmp.eq.s32.totalorder %s18, 0
      %p65 = por %p63, %p64
      %p66 = scmp.ne.s32.totalorder %s52, %s53
      %p67 = scmp.eq.s32.totalorder %s19, 1
      %p68 = por %p66, %p67
      %p70 = scmp.ne.s32.totalorder %s53, %s69
      %p71 = scmp.eq.s32.totalorder %s19, 0
      %p72 = por %p70, %p71
      %p73 = scmp.le.s32.totalorder 1, %s13
      %p74 = scmp.lt.s32.totalorder %s13, 3
      %p75 = pnand %p73, %p74
      %p76 = pneg %p75
      // Predicated region
      $region9: #{tpu_custom_call.1} parent=5 // pred_check
        _
      $region10: #{tpu_custom_call.1} parent=5 // pred_check_branch
        %78 = sbr.rel (%p75) target = $region12
      $region11: #{tpu_custom_call.1} parent=5 // pred_region
        %s79 = ssub.s32 %s13, 1
      $region12: #{tpu_custom_call.1} parent=5 // pred_fallthru
        _
      %p80 = scmp.lt.s32.totalorder %s13, 2
      // Predicated region
      $region13: #{tpu_custom_call.1} parent=5 // pred_check
        %p81 = pneg %p80
      $region14: #{tpu_custom_call.1} parent=5 // pred_check_branch
        %83 = sbr.rel (%p81) target = $region16
      $region15: #{tpu_custom_call.1} parent=5 // pred_region
        // Predicated region
        $region17: #{tpu_custom_call.1} parent=15 // pred_check
          %p84 = pneg %p33
        $region18: #{tpu_custom_call.1} parent=15 // pred_check_branch
          %86 = sbr.rel (%p84) target = $region20
        $region19: #{tpu_custom_call.1} parent=15 // pred_region
          %s87 = sand.u32 %s23, 1
          %s88 = scalar_lea.sflag [#allocation3], %s87
          %s89 = sand.u32 %s23, 1
          %s90 = smul.addr %s89, 64
          %s91 = scalar_lea.vmem [#allocation2], %s90
          %s92 = smul.u32 4, %s13
          %s94 = ssub.s32 1024, 1024
          %95 = vsyncadd %s88, %s94
          %s96 = smul.addr %s92, 2
          %s97 = smul.addr %s96, 128
          %s98 = scalar_lea.hbm %s0, %s97
          %s99 = sshll.u32 %s91, 4
          %s100 = int_to_ptr.vmem [resolvable:$true] %s99
          %105 = dma.hbm_to_vmem [thread:$0]  %s98, 1024, %s100, %s88, 128, 128, 8
        $region20: #{tpu_custom_call.1} parent=15 // pred_fallthru
          _
      $region16: #{tpu_custom_call.1} parent=5 // pred_fallthru
        _
      %p106 = scmp.le.s32.totalorder 1, %s13
      %p107 = scmp.lt.s32.totalorder %s13, 3
      %p108 = pnand %p106, %p107
      %p109 = pneg %p108
      // Predicated region
      $region21: #{tpu_custom_call.1} parent=5 // pred_check
        _
      $region22: #{tpu_custom_call.1} parent=5 // pred_check_branch
        %111 = sbr.rel (%p108) target = $region24
      $region23: #{tpu_custom_call.1} parent=5 // pred_region
        %s112 = ssub.s32 %s13, 1
        %s113 = sand.u32 %s26, 1
        %s114 = scalar_lea.sflag [#allocation3], %s113
        %s115 = sand.u32 %s26, 1
        %s116 = smul.addr %s115, 64
        %s117 = scalar_lea.vmem [#allocation2], %s116
        // Predicated region
        $region25: #{tpu_custom_call.1} parent=23 // pred_check
          %p118 = pneg %p39
        $region26: #{tpu_custom_call.1} parent=23 // pred_check_branch
          %120 = sbr.rel (%p118) target = $region28
        $region27: #{tpu_custom_call.1} parent=23 // pred_region
          %121 = dma.done %s114, 1024
        $region28: #{tpu_custom_call.1} parent=23 // pred_fallthru
          _
        %s122 = sand.u32 %s26, 1
        %s123 = scalar_lea.sflag [#allocation3], %s122
        %s124 = sand.u32 %s26, 1
        %s125 = smul.addr %s124, 64
        %s126 = scalar_lea.vmem [#allocation2], %s125
        %p127 = pneg %p39
        %p128 = pneg %p36
        %p129 = pneg %p65
        %p130 = pneg %p62
        %s131 = sand.u32 %s52, 1
        %s132 = scalar_lea.sflag [#allocation4], %s131
        %s133 = sand.u32 %s52, 1
        %s134 = smul.addr %s133, 128
        %s135 = scalar_lea.vmem [#allocation5], %s134
        %s136 = smul.u32 4, %s18
        %s137 = smul.u32 4, %s18
        %v138 = vld [vmem:[%s117] sm:$0xff]
        %v139 = vld [vmem:[%s117 + $0x8] sm:$0xff]
        %v140 = vld [vmem:[%s117 + $0x10] sm:$0xff]
        %v141 = vld [vmem:[%s117 + $0x18] sm:$0xff]
        %v142 = vld [vmem:[%s117 + $0x20] sm:$0xff]
        %v143 = vld [vmem:[%s117 + $0x28] sm:$0xff]
        %v144 = vld [vmem:[%s117 + $0x30] sm:$0xff]
        %v145 = vld [vmem:[%s117 + $0x38] sm:$0xff]
        %154 = vrot.lane.b32.xlu0 %v138, 1
        %v155 = vpop.permute.xlu0 %154
        %156 = vrot.lane.b32.xlu0 %v139, 1
        %v157 = vpop.permute.xlu0 %156
        %158 = vrot.lane.b32.xlu0 %v140, 1
        %v159 = vpop.permute.xlu0 %158
        %160 = vrot.lane.b32.xlu0 %v141, 1
        %v161 = vpop.permute.xlu0 %160
        %162 = vrot.lane.b32.xlu0 %v142, 1
        %v163 = vpop.permute.xlu0 %162
        %164 = vrot.lane.b32.xlu0 %v143, 1
        %v165 = vpop.permute.xlu0 %164
        %166 = vrot.lane.b32.xlu0 %v144, 1
        %v167 = vpop.permute.xlu0 %166
        %168 = vrot.lane.b32.xlu0 %v145, 1
        %v169 = vpop.permute.xlu0 %168
        %vm178 = vcmask 7168
        %v179 = vsel %vm178, %v138, %v155
        %v180 = vsel %vm178, %v139, %v157
        %v181 = vsel %vm178, %v140, %v159
        %v182 = vsel %vm178, %v141, %v161
        %v183 = vsel %vm178, %v142, %v163
        %v184 = vsel %vm178, %v143, %v165
        %v185 = vsel %vm178, %v144, %v167
        %v186 = vsel %vm178, %v145, %v169
        %187 = vrot.lane.b32.xlu0 %v138, 127
        %v188 = vpop.permute.xlu0 %187
        %189 = vrot.lane.b32.xlu0 %v139, 127
        %v190 = vpop.permute.xlu0 %189
        %191 = vrot.lane.b32.xlu0 %v140, 127
        %v192 = vpop.permute.xlu0 %191
        %193 = vrot.lane.b32.xlu0 %v141, 127
        %v194 = vpop.permute.xlu0 %193
        %195 = vrot.lane.b32.xlu0 %v142, 127
        %v196 = vpop.permute.xlu0 %195
        %197 = vrot.lane.b32.xlu0 %v143, 127
        %v198 = vpop.permute.xlu0 %197
        %199 = vrot.lane.b32.xlu0 %v144, 127
        %v200 = vpop.permute.xlu0 %199
        %201 = vrot.lane.b32.xlu0 %v145, 127
        %v202 = vpop.permute.xlu0 %201
        %vm211 = vcmask 121856
        %v212 = vsel %vm211, %v188, %v138
        %v213 = vsel %vm211, %v190, %v139
        %v214 = vsel %vm211, %v192, %v140
        %v215 = vsel %vm211, %v194, %v141
        %v216 = vsel %vm211, %v196, %v142
        %v217 = vsel %vm211, %v198, %v143
        %v218 = vsel %vm211, %v200, %v144
        %v219 = vsel %vm211, %v202, %v145
        %v220 = vsub.f32 %v212, %v179
        %v221 = vsub.f32 %v213, %v180
        %v222 = vsub.f32 %v214, %v181
        %v223 = vsub.f32 %v215, %v182
        %v224 = vsub.f32 %v216, %v183
        %v225 = vsub.f32 %v217, %v184
        %v226 = vsub.f32 %v218, %v185
        %v227 = vsub.f32 %v219, %v186
        %v228 = vadd.f32 %v179, %v212
        %v229 = vadd.f32 %v180, %v213
        %v230 = vadd.f32 %v181, %v214
        %v231 = vadd.f32 %v182, %v215
        %v232 = vadd.f32 %v183, %v216
        %v233 = vadd.f32 %v184, %v217
        %v234 = vadd.f32 %v185, %v218
        %v235 = vadd.f32 %v186, %v219
        %v236 = vmul.f32 %v138, 2.0
        %v237 = vmul.f32 %v139, 2.0
        %v238 = vmul.f32 %v140, 2.0
        %v239 = vmul.f32 %v141, 2.0
        %v240 = vmul.f32 %v142, 2.0
        %v241 = vmul.f32 %v143, 2.0
        %v242 = vmul.f32 %v144, 2.0
        %v243 = vmul.f32 %v145, 2.0
        %v244 = vadd.f32 %v228, %v236
        %v245 = vadd.f32 %v229, %v237
        %v246 = vadd.f32 %v230, %v238
        %v247 = vadd.f32 %v231, %v239
        %v248 = vadd.f32 %v232, %v240
        %v249 = vadd.f32 %v233, %v241
        %v250 = vadd.f32 %v234, %v242
        %v251 = vadd.f32 %v235, %v243
        %vm260 = vcmask 1040384
        %v261 = vrot.slane %v220, 7
        %v262 = vrot.slane %v221, 7
        %v263 = vsel %vm260, %v261, %v262
        %v264 = vrot.slane %v222, 7
        %v265 = vrot.slane %v223, 7
        %v266 = vsel %vm260, %v264, %v265
        %v267 = vrot.slane %v224, 7
        %v268 = vrot.slane %v225, 7
        %v269 = vsel %vm260, %v267, %v268
        %v270 = vrot.slane %v226, 7
        %v271 = vrot.slane %v227, 7
        %v272 = vsel %vm260, %v270, %v271
        %v281 = vsel %vm260, %v220, %v261
        %v282 = vsel %vm260, %v222, %v264
        %v283 = vsel %vm260, %v224, %v267
        %v284 = vsel %vm260, %v226, %v270
        %v285 = vmul.f32 %v220, 2.0
        %v286 = vmul.f32 %v221, 2.0
        %v287 = vmul.f32 %v222, 2.0
        %v288 = vmul.f32 %v223, 2.0
        %v289 = vmul.f32 %v224, 2.0
        %v290 = vmul.f32 %v225, 2.0
        %v291 = vmul.f32 %v226, 2.0
        %v292 = vmul.f32 %v227, 2.0
        %v293 = vadd.f32 %v281, %v285
        %v294 = vadd.f32 %v263, %v286
        %v295 = vadd.f32 %v282, %v287
        %v296 = vadd.f32 %v266, %v288
        %v297 = vadd.f32 %v283, %v289
        %v298 = vadd.f32 %v269, %v290
        %v299 = vadd.f32 %v284, %v291
        %v300 = vadd.f32 %v272, %v292
        %vm301 = vcmask 1046528
        %v302 = vrot.slane %v220, 1
        %v303 = vrot.slane %v221, 1
        %v304 = vsel %vm301, %v302, %v303
        %v305 = vrot.slane %v222, 1
        %v306 = vrot.slane %v223, 1
        %v307 = vsel %vm301, %v305, %v306
        %v308 = vrot.slane %v224, 1
        %v309 = vrot.slane %v225, 1
        %v310 = vsel %vm301, %v308, %v309
        %v311 = vrot.slane %v226, 1
        %v312 = vrot.slane %v227, 1
        %v313 = vsel %vm301, %v311, %v312
        %v322 = vsel %vm301, %v303, %v221
        %v323 = vsel %vm301, %v306, %v223
        %v324 = vsel %vm301, %v309, %v225
        %v325 = vsel %vm301, %v312, %v227
        %v326 = vadd.f32 %v293, %v304
        %v327 = vadd.f32 %v294, %v322
        %v328 = vadd.f32 %v295, %v307
        %v329 = vadd.f32 %v296, %v323
        %v330 = vadd.f32 %v297, %v310
        %v331 = vadd.f32 %v298, %v324
        %v332 = vadd.f32 %v299, %v313
        %v333 = vadd.f32 %v300, %v325
        %v334 = vmul.f32 %v326, 0.125
        %v335 = vmul.f32 %v327, 0.125
        %v336 = vmul.f32 %v328, 0.125
        %v337 = vmul.f32 %v329, 0.125
        %v338 = vmul.f32 %v330, 0.125
        %v339 = vmul.f32 %v331, 0.125
        %v340 = vmul.f32 %v332, 0.125
        %v341 = vmul.f32 %v333, 0.125
        %v350 = vrot.slane %v244, 1
        %v351 = vrot.slane %v245, 1
        %v352 = vsel %vm301, %v350, %v351
        %v353 = vrot.slane %v246, 1
        %v354 = vrot.slane %v247, 1
        %v355 = vsel %vm301, %v353, %v354
        %v356 = vrot.slane %v248, 1
        %v357 = vrot.slane %v249, 1
        %v358 = vsel %vm301, %v356, %v357
        %v359 = vrot.slane %v250, 1
        %v360 = vrot.slane %v251, 1
        %v361 = vsel %vm301, %v359, %v360
        %v370 = vsel %vm301, %v351, %v245
        %v371 = vsel %vm301, %v354, %v247
        %v372 = vsel %vm301, %v357, %v249
        %v373 = vsel %vm301, %v360, %v251
        %v374 = vrot.slane %v244, 7
        %v375 = vrot.slane %v245, 7
        %v376 = vsel %vm260, %v374, %v375
        %v377 = vrot.slane %v246, 7
        %v378 = vrot.slane %v247, 7
        %v379 = vsel %vm260, %v377, %v378
        %v380 = vrot.slane %v248, 7
        %v381 = vrot.slane %v249, 7
        %v382 = vsel %vm260, %v380, %v381
        %v383 = vrot.slane %v250, 7
        %v384 = vrot.slane %v251, 7
        %v385 = vsel %vm260, %v383, %v384
        %v394 = vsel %vm260, %v244, %v374
        %v395 = vsel %vm260, %v246, %v377
        %v396 = vsel %vm260, %v248, %v380
        %v397 = vsel %vm260, %v250, %v383
        %v398 = vsub.f32 %v352, %v394
        %v399 = vsub.f32 %v370, %v376
        %v400 = vsub.f32 %v355, %v395
        %v401 = vsub.f32 %v371, %v379
        %v402 = vsub.f32 %v358, %v396
        %v403 = vsub.f32 %v372, %v382
        %v404 = vsub.f32 %v361, %v397
        %v405 = vsub.f32 %v373, %v385
        %v406 = vmul.f32 %v398, 0.125
        %v407 = vmul.f32 %v399, 0.125
        %v408 = vmul.f32 %v400, 0.125
        %v409 = vmul.f32 %v401, 0.125
        %v410 = vmul.f32 %v402, 0.125
        %v411 = vmul.f32 %v403, 0.125
        %v412 = vmul.f32 %v404, 0.125
        %v413 = vmul.f32 %v405, 0.125
        %vm414 = vcmask 130048
        %415 = vst.msk [vmem:[%s135] sm:$0xff] %vm414, %v334
        %416 = vst.msk [vmem:[%s135 + $0x8] sm:$0xff] %vm414, %v335
        %417 = vst.msk [vmem:[%s135 + $0x10] sm:$0xff] %vm414, %v406
        %418 = vst.msk [vmem:[%s135 + $0x18] sm:$0xff] %vm414, %v407
        %419 = vst.msk [vmem:[%s135 + $0x20] sm:$0xff] %vm414, %v336
        %420 = vst.msk [vmem:[%s135 + $0x28] sm:$0xff] %vm414, %v337
        %421 = vst.msk [vmem:[%s135 + $0x30] sm:$0xff] %vm414, %v408
        %422 = vst.msk [vmem:[%s135 + $0x38] sm:$0xff] %vm414, %v409
        %423 = vst.msk [vmem:[%s135 + $0x40] sm:$0xff] %vm414, %v338
        %424 = vst.msk [vmem:[%s135 + $0x48] sm:$0xff] %vm414, %v339
        %425 = vst.msk [vmem:[%s135 + $0x50] sm:$0xff] %vm414, %v410
        %426 = vst.msk [vmem:[%s135 + $0x58] sm:$0xff] %vm414, %v411
        %427 = vst.msk [vmem:[%s135 + $0x60] sm:$0xff] %vm414, %v340
        %428 = vst.msk [vmem:[%s135 + $0x68] sm:$0xff] %vm414, %v341
        %429 = vst.msk [vmem:[%s135 + $0x70] sm:$0xff] %vm414, %v412
        %430 = vst.msk [vmem:[%s135 + $0x78] sm:$0xff] %vm414, %v413
        %s431 = sand.u32 %s52, 1
        %s432 = scalar_lea.sflag [#allocation4], %s431
        %s433 = sand.u32 %s52, 1
        %s434 = smul.addr %s433, 128
        %s435 = scalar_lea.vmem [#allocation5], %s434
        // Predicated region
        $region29: #{tpu_custom_call.1} parent=23 // pred_check
          %p436 = pneg %p62
        $region30: #{tpu_custom_call.1} parent=23 // pred_check_branch
          %438 = sbr.rel (%p436) target = $region32
        $region31: #{tpu_custom_call.1} parent=23 // pred_region
          %s439 = smul.u32 4, %s18
          %s441 = ssub.s32 2048, 2048
          %442 = vsyncadd %s432, %s441
          %s443 = smul.addr %s439, 4
          %s444 = smul.addr %s443, 128
          %s445 = scalar_lea.hbm %s1, %s444
          %s446 = sshll.u32 %s435, 4
          %s447 = int_to_ptr.vmem [resolvable:$true] %s446
          %452 = dma.vmem_to_hbm [thread:$0]  %s447, 2048, %s445, %s432, 128, 128, 8
        $region32: #{tpu_custom_call.1} parent=23 // pred_fallthru
          _
      $region24: #{tpu_custom_call.1} parent=5 // pred_fallthru
        _
      %p453 = scmp.le.s32.totalorder 2, %s13
      // Predicated region
      $region33: #{tpu_custom_call.1} parent=5 // pred_check
        %p454 = pneg %p453
      $region34: #{tpu_custom_call.1} parent=5 // pred_check_branch
        %456 = sbr.rel (%p454) target = $region36
      $region35: #{tpu_custom_call.1} parent=5 // pred_region
        %s457 = ssub.s32 %s13, 2
        // Predicated region
        $region37: #{tpu_custom_call.1} parent=35 // pred_check
          %p458 = pneg %p68
        $region38: #{tpu_custom_call.1} parent=35 // pred_check_branch
          %460 = sbr.rel (%p458) target = $region40
        $region39: #{tpu_custom_call.1} parent=35 // pred_region
          %s461 = sand.u32 %s53, 1
          %s462 = scalar_lea.sflag [#allocation4], %s461
          %s463 = sand.u32 %s53, 1
          %s464 = smul.addr %s463, 128
          %s465 = scalar_lea.vmem [#allocation5], %s464
          %466 = dma.done %s462, 2048
        $region40: #{tpu_custom_call.1} parent=35 // pred_fallthru
          _
      $region36: #{tpu_custom_call.1} parent=5 // pred_fallthru
        _
    $region6: #{tpu_custom_call.1} parent=1 // loop_footer
      %s17 = sadd.s32 1, %s13
    $region7: #{tpu_custom_call.1} parent=1 // loop_footer_branch
      %12 = sbr.rel target = $region3
    $region8: #{tpu_custom_call.1} parent=1 // loop_exit
      _
    %467 = vsyncpa [#allocation3], 1
    %s468 = scalar_lea.sflag [#allocation3], 1
    %469 = vsyncpa %s468, 1
    %470 = vsyncpa [#allocation4], 1
    %s471 = scalar_lea.sflag [#allocation4], 1
    %472 = vsyncpa %s471, 1

</llo_original>
